<compile_context>
chip_gen: v7x
topology: tpu7x:2x2x1
jax: 0.10.0
libtpu: 0.0.40
codegen_flags: <defaults>
</compile_context>

<pallas_src>
import functools

import numpy as np
import jax
import jax.numpy as jnp
from jax import lax
from jax.experimental import pallas as pl
from jax.experimental.pallas import tpu as pltpu


def _i_module_kernel(x_ref, w13_ref, b13_ref, wbf_ref, b2p_ref, out_ref, *, h):
    # x_ref  : (M, W*CinP)              M = Nb*H rows (Nb batched images), CinP = Cin padded to 8
    # w13_ref: (W*CinP, W*Hd + W*2*Od)  fused block-diagonal 1x1 weights (bf16)
    # b13_ref: (1, W*Hd + W*2*Od)       f32
    # wbf_ref: (3*W*Hd, W*2*Od)         dy-major banded 3x3 weights (bf16)
    # b2p_ref: (1, W*2*Od)              3x3 bias placed in branch1 lanes, 0 elsewhere (f32)
    # out_ref: (M, W*2*Od)              lane-dense output slab (f32)
    M, _ = x_ref.shape
    whd = wbf_ref.shape[0] // 3          # W * Hd

    x = x_ref[...].astype(w13_ref.dtype)                                  # bf16 MXU operand

    # Fused 1x1 convs + bias + ReLU in one MXU pass.  Columns [0, W*Hd) hold the branch1
    # hidden activation y1; columns [W*Hd, ...) hold branch2 already placed at its final
    # channel-interleaved output lanes (its branch1 slots are exactly zero).
    z = jnp.dot(x, w13_ref[...], preferred_element_type=jnp.float32) + b13_ref[...]
    z = jnp.maximum(z, 0.0)                                               # (M, W*Hd + W*2*Od)
    y1 = z[:, :whd]                                                       # (M, W*Hd)   128-lane aligned
    branch2_placed = z[:, whd:]                                           # (M, W*2*Od) 128-lane aligned

    # dy = -1 / +1 operands via XLU sublane rolls; zero rows that would wrap across an
    # image boundary inside the batched block (pltpu.roll follows np.roll semantics:
    # roll(y1, 1, 0)[i] == y1[i-1]).
    row = lax.broadcasted_iota(jnp.int32, (M, whd), 0)
    y1_dn = jnp.where(row % h == 0, 0.0, pltpu.roll(y1, shift=1, axis=0))          # y1[i-1]
    y1_up = jnp.where(row % h == h - 1, 0.0, pltpu.roll(y1, shift=M - 1, axis=0))  # y1[i+1]

    # 3x3 conv (padding=1) as ONE matmul against the dy-major banded weights.  The dx
    # taps and the width-wise zero padding are baked into wbf on the host.
    lhs = jnp.concatenate([y1_dn, y1, y1_up], axis=1).astype(wbf_ref.dtype)  # (M, 3*W*Hd)
    acc = jnp.dot(lhs, wbf_ref[...], preferred_element_type=jnp.float32)     # (M, W*2*Od)
    branch1_placed = jnp.maximum(acc + b2p_ref[...], 0.0)

    # branch1 lanes of branch2_placed are zero and vice versa -> the sum IS the channel
    # concatenation, produced directly in the lane-dense output layout.
    out_ref[...] = (branch1_placed + branch2_placed).astype(out_ref.dtype)


def _choose_block_batch(n, h, target_m=256):
    """Images per grid step: fill MXU rows (M = nb*h ~ target_m; use 128 for v5e) while
    keeping >= 2 grid blocks so both of v7x's TensorCores get work."""
    nb = max(1, min(n, target_m // max(h, 1)))
    if n >= 2:
        nb = min(nb, (n + 1) // 2)
    while n % nb:                 # integer number of grid blocks
        nb -= 1
    return nb


def i_module_forward_slab(x_slab, packed):
    """Slab-layout forward: (N, H, W*CinP) f32 -> (N, H, W*2*Od) f32.

    Use this entry point inside a larger network to keep activations in the lane-dense
    slab layout and skip the NCHW <-> slab transposes between consecutive modules."""
    w13, b13, wbf, b2p = packed
    n, h, wcp = x_slab.shape
    w2od = wbf.shape[1]
    nb = _choose_block_batch(n, h)
    m = nb * h

    x2 = x_slab.reshape(n * h, wcp)     # flatten batch into the matmul M dimension

    # NOTE: weights are < 0.5 MiB at W=16.  For large W pass pipeline_mode=pl.Buffered(1)
    # on the grid-constant weight specs (or raise vmem_limit_bytes) to stay under v7x's
    # 32 MiB scoped VMEM limit.
    out2 = pl.pallas_call(
        functools.partial(_i_module_kernel, h=h),
        out_shape=jax.ShapeDtypeStruct((n * h, w2od), jnp.float32),
        grid_spec=pltpu.PrefetchScalarGridSpec(
            num_scalar_prefetch=0,
            grid=(n // nb,),
            in_specs=[
                pl.BlockSpec((m, wcp), lambda i: (i, 0)),
                pl.BlockSpec(w13.shape, lambda i: (0, 0)),
                pl.BlockSpec(b13.shape, lambda i: (0, 0)),
                pl.BlockSpec(wbf.shape, lambda i: (0, 0)),
                pl.BlockSpec(b2p.shape, lambda i: (0, 0)),
            ],
            out_specs=pl.BlockSpec((m, w2od), lambda i: (i, 0)),
        ),
        compiler_params=pltpu.CompilerParams(
            dimension_semantics=("parallel",)),   # batch blocks independent -> 2-TC sharding on v7x
    )(x2, w13, b13, wbf, b2p)
    return out2.reshape(n, h, w2od)


def i_module_forward(x_nchw, packed):
    """NCHW convenience wrapper: (N, Cin, H, W) f32 -> (N, 2*Od, H, W) f32."""
    w13, _, wbf, _ = packed
    n, cin, h, w = x_nchw.shape
    cin_p = w13.shape[0] // w
    two_od = wbf.shape[1] // w

    x = jnp.transpose(x_nchw, (0, 2, 3, 1))                     # NHWC
    if cin_p != cin:                                            # zero-pad Cin -> CinP (=8)
        x = jnp.pad(x, ((0, 0), (0, 0), (0, 0), (0, cin_p - cin)))
    x_slab = x.reshape(n, h, w * cin_p)                         # lane-dense, W*CinP = 128 lanes

    out_slab = i_module_forward_slab(x_slab, packed)
    return jnp.transpose(out_slab.reshape(n, h, w, two_od), (0, 3, 1, 2))


def pack_params(torch_params, W, mxu_dtype=jnp.bfloat16):
    """Pack PyTorch-layout conv weights into the lane-dense kernel weights.
    Matmul operands are stored in mxu_dtype (bf16 by default); biases stay f32."""
    w1_t, b1_t, w2_t, b2_t, w3_t, b3_t = [np.asarray(a, np.float32) for a in torch_params]
    hd, cin = w1_t.shape[0], w1_t.shape[1]
    od = w3_t.shape[0]
    cin_p = ((cin + 7) // 8) * 8                  # pad K so the input slab is W*CinP lanes
    w1 = w1_t[:, :, 0, 0].T                       # (Cin, Hd)
    w3 = w3_t[:, :, 0, 0].T                       # (Cin, Od)
    w2 = np.transpose(w2_t, (2, 3, 1, 0))         # (3, 3, Hd, Od)  HWIO

    whd, w2od = W * hd, W * 2 * od

    # Fused block-diagonal 1x1 weights; branch2 placed at its final output lanes.
    w13 = np.zeros((W * cin_p, whd + w2od), np.float32)
    b13 = np.zeros((1, whd + w2od), np.float32)
    for w in range(W):
        w13[w * cin_p:w * cin_p + cin, w * hd:(w + 1) * hd] = w1
        w13[w * cin_p:w * cin_p + cin,
            whd + w * 2 * od + od: whd + (w + 1) * 2 * od] = w3
        b13[0, w * hd:(w + 1) * hd] = b1_t
        b13[0, whd + w * 2 * od + od: whd + (w + 1) * 2 * od] = b3_t

    # dy-major banded 3x3 weights:
    #   wbf[dy*W*Hd + w_in*hd + k, j*2*Od + c] = w2[dy, dx, k, c],  dx = w_in - j + 1.
    # Width-wise SAME padding is implicit (out-of-range w_in blocks simply absent).
    wbf = np.zeros((3 * whd, w2od), np.float32)
    b2p = np.zeros((1, w2od), np.float32)
    for j in range(W):
        b2p[0, j * 2 * od: j * 2 * od + od] = b2_t
        for dx in range(3):
            w_in = j + dx - 1
            if 0 <= w_in < W:
                for dy in range(3):
                    wbf[dy * whd + w_in * hd: dy * whd + (w_in + 1) * hd,
                        j * 2 * od: j * 2 * od + od] = w2[dy, dx]

    return (jnp.asarray(w13, mxu_dtype), jnp.asarray(b13, jnp.float32),
            jnp.asarray(wbf, mxu_dtype), jnp.asarray(b2p, jnp.float32))


def make_params(key, in_dim, h_dim, out_dim):
    """Deterministic synthetic parameters in PyTorch Conv2d layouts + HWIO reference copies."""
    ks = jax.random.split(key, 6)
    w1_t = jax.random.normal(ks[0], (h_dim, in_dim, 1, 1), jnp.float32) * 0.2
    b1_t = jax.random.normal(ks[1], (h_dim,), jnp.float32) * 0.1
    w2_t = jax.random.normal(ks[2], (out_dim, h_dim, 3, 3), jnp.float32) * 0.1
    b2_t = jax.random.normal(ks[3], (out_dim,), jnp.float32) * 0.1
    w3_t = jax.random.normal(ks[4], (out_dim, in_dim, 1, 1), jnp.float32) * 0.2
    b3_t = jax.random.normal(ks[5], (out_dim,), jnp.float32) * 0.1
    torch_params = (w1_t, b1_t, w2_t, b2_t, w3_t, b3_t)
    ref_params = (jnp.transpose(w1_t, (2, 3, 1, 0)), b1_t,
                  jnp.transpose(w2_t, (2, 3, 1, 0)), b2_t,
                  jnp.transpose(w3_t, (2, 3, 1, 0)), b3_t)
    return torch_params, ref_params


def reference_forward(x_nchw, ref_params, mxu_dtype=None):
    """XLA reference.  If mxu_dtype is set, the matmul operands (x, weights, hidden
    activation) are rounded through that dtype, mirroring the kernel's MXU inputs."""
    w1, b1, w2, b2, w3, b3 = ref_params
    if mxu_dtype is not None:
        q = lambda a: a.astype(mxu_dtype).astype(jnp.float32)
    else:
        q = lambda a: a
    dn = ("NHWC", "HWIO", "NHWC")
    prec = lax.Precision.HIGHEST
    x = q(jnp.transpose(x_nchw, (0, 2, 3, 1)))
    y1 = jax.nn.relu(lax.conv_general_dilated(x, q(w1), (1, 1), "VALID",
                                              dimension_numbers=dn, precision=prec) + b1)
    y1 = jax.nn.relu(lax.conv_general_dilated(q(y1), q(w2), (1, 1), "SAME",
                                              dimension_numbers=dn, precision=prec) + b2)
    y2 = jax.nn.relu(lax.conv_general_dilated(x, q(w3), (1, 1), "VALID",
                                              dimension_numbers=dn, precision=prec) + b3)
    out = jnp.concatenate([y1, y2], axis=-1)
    return jnp.transpose(out, (0, 3, 1, 2))


if __name__ == "__main__":
    # N=8 so the M-batched grid actually runs Nb=4 images/step (M = 64 MXU rows),
    # exercises the image-boundary masking of the dy rolls, and keeps 2 parallel blocks.
    N, in_dim, h_dim, out_dim, H, W = 8, 4, 8, 8, 16, 16
    key = jax.random.PRNGKey(0)
    kx, kp = jax.random.split(key)
    x = jax.random.normal(kx, (N, in_dim, H, W), jnp.float32)
    torch_params, ref_params = make_params(kp, in_dim, h_dim, out_dim)
    packed = pack_params(torch_params, W)

    out = jax.block_until_ready(i_module_forward(x, packed))
    assert out.shape == (N, 2 * out_dim, H, W)

    # Tight check vs. a reference that applies the same bf16 operand rounding:
    # validates the packing / banding / boundary masking / lane routing exactly.
    exp_q = jax.block_until_ready(reference_forward(x, ref_params, mxu_dtype=jnp.bfloat16))
    np.testing.assert_allclose(np.asarray(out), np.asarray(exp_q), rtol=5e-3, atol=5e-3)

    # Loose check vs. the pure-f32 module semantics (tolerance loosened for the bf16
    # MXU operands, as flagged in the perf review).
    exp_f32 = jax.block_until_ready(reference_forward(x, ref_params))
    np.testing.assert_allclose(np.asarray(out), np.asarray(exp_f32), rtol=5e-2, atol=5e-2)

    print("KERNEL_OK")
</pallas_src>

<mosaic_0001>
module attributes {stable_mosaic.version = 11 : i64} {
  func.func @_i_module_kernel(%arg0: i32, %arg1: memref<64x128xf32, #tpu.memory_space<vmem>>, %arg2: memref<128x384xbf16, #tpu.memory_space<vmem>>, %arg3: memref<1x384xf32, #tpu.memory_space<vmem>>, %arg4: memref<384x256xbf16, #tpu.memory_space<vmem>>, %arg5: memref<1x256xf32, #tpu.memory_space<vmem>>, %arg6: memref<64x256xf32, #tpu.memory_space<vmem>>) attributes {dimension_semantics = [#tpu.dimension_semantics<parallel>], iteration_bounds = array<i64: 2>, scalar_prefetch = 0 : i64, scratch_operands = 0 : i64, tpu.core_type = #tpu.core_type<tc>, window_params = [{transform_indices = @transform_0, window_bounds = array<i64: 64, 128>}, {pipeline_mode = #tpu.pipeline_mode<synchronous>, transform_indices = @transform_1, window_bounds = array<i64: 128, 384>}, {pipeline_mode = #tpu.pipeline_mode<synchronous>, transform_indices = @transform_2, window_bounds = array<i64: 1, 384>}, {pipeline_mode = #tpu.pipeline_mode<synchronous>, transform_indices = @transform_3, window_bounds = array<i64: 384, 256>}, {pipeline_mode = #tpu.pipeline_mode<synchronous>, transform_indices = @transform_4, window_bounds = array<i64: 1, 256>}, {transform_indices = @transform_5, window_bounds = array<i64: 64, 256>}]} {
    %c0 = arith.constant 0 : index
    %c0_0 = arith.constant 0 : index
    %0 = vector.load %arg1[%c0, %c0_0] : memref<64x128xf32, #tpu.memory_space<vmem>>, vector<64x128xf32>
    %1 = arith.truncf %0 : vector<64x128xf32> to vector<64x128xbf16>
    %c0_1 = arith.constant 0 : index
    %c0_2 = arith.constant 0 : index
    %2 = vector.load %arg2[%c0_1, %c0_2] : memref<128x384xbf16, #tpu.memory_space<vmem>>, vector<128x384xbf16>
    %cst = arith.constant dense<0.000000e+00> : vector<64x384xf32>
    %3 = tpu.matmul %1, %2, %cst {dimension_numbers = #tpu.dot_dimension_numbers<[1], [0], [0], [1], [0, 0, 1, 1], [], []>} : vector<64x128xbf16>, vector<128x384xbf16>, vector<64x384xf32> -> vector<64x384xf32>
    %c0_3 = arith.constant 0 : index
    %c0_4 = arith.constant 0 : index
    %4 = vector.load %arg3[%c0_3, %c0_4] : memref<1x384xf32, #tpu.memory_space<vmem>>, vector<1x384xf32>
    %5 = vector.broadcast %4 : vector<1x384xf32> to vector<64x384xf32>
    %6 = arith.addf %3, %5 : vector<64x384xf32>
    %cst_5 = arith.constant 0.000000e+00 : f32
    %7 = vector.broadcast %cst_5 : f32 to vector<64x384xf32>
    %8 = arith.maximumf %6, %7 : vector<64x384xf32>
    %9 = vector.extract_strided_slice %8 {offsets = [0, 0], sizes = [64, 128], strides = [1, 1]} : vector<64x384xf32> to vector<64x128xf32>
    %10 = vector.extract_strided_slice %8 {offsets = [0, 128], sizes = [64, 256], strides = [1, 1]} : vector<64x384xf32> to vector<64x256xf32>
    %11 = tpu.iota {dimensions = array<i32: 0>} : vector<64x128xi32>
    %c16_i32 = arith.constant 16 : i32
    %c0_i32 = arith.constant 0 : i32
    %12 = arith.cmpi eq, %c16_i32, %c0_i32 : i32
    %c1_i32 = arith.constant 1 : i32
    %13 = arith.select %12, %c1_i32, %c16_i32 : i32
    %14 = vector.broadcast %13 : i32 to vector<64x128xi32>
    %15 = arith.remsi %11, %14 : vector<64x128xi32>
    %c0_i32_6 = arith.constant 0 : i32
    %16 = vector.broadcast %c0_i32_6 : i32 to vector<64x128xi32>
    %17 = arith.cmpi ne, %15, %16 : vector<64x128xi32>
    %c0_i32_7 = arith.constant 0 : i32
    %18 = vector.broadcast %c0_i32_7 : i32 to vector<64x128xi32>
    %19 = arith.cmpi slt, %15, %18 : vector<64x128xi32>
    %c0_i32_8 = arith.constant 0 : i32
    %20 = arith.cmpi slt, %13, %c0_i32_8 : i32
    %21 = vector.broadcast %20 : i1 to vector<64x128xi1>
    %22 = vector.broadcast %21 : vector<64x128xi1> to vector<64x128xi1>
    %23 = arith.xori %19, %22 : vector<64x128xi1>
    %24 = arith.andi %23, %17 : vector<64x128xi1>
    %25 = vector.broadcast %13 : i32 to vector<64x128xi32>
    %26 = arith.addi %15, %25 : vector<64x128xi32>
    %27 = arith.select %24, %26, %15 : vector<64x128xi1>, vector<64x128xi32>
    %c0_i32_9 = arith.constant 0 : i32
    %28 = vector.broadcast %c0_i32_9 : i32 to vector<64x128xi32>
    %29 = arith.cmpi eq, %27, %28 : vector<64x128xi32>
    %c1_i32_10 = arith.constant 1 : i32
    %30 = tpu.dynamic_rotate %9 by %c1_i32_10 dim 0 : vector<64x128xf32>, i32 -> vector<64x128xf32>
    %cst_11 = arith.constant 0.000000e+00 : f32
    %31 = vector.broadcast %cst_11 : f32 to vector<64x128xf32>
    %32 = arith.select %29, %31, %30 : vector<64x128xi1>, vector<64x128xf32>
    %c16_i32_12 = arith.constant 16 : i32
    %c0_i32_13 = arith.constant 0 : i32
    %33 = arith.cmpi eq, %c16_i32_12, %c0_i32_13 : i32
    %c1_i32_14 = arith.constant 1 : i32
    %34 = arith.select %33, %c1_i32_14, %c16_i32_12 : i32
    %35 = vector.broadcast %34 : i32 to vector<64x128xi32>
    %36 = arith.remsi %11, %35 : vector<64x128xi32>
    %c0_i32_15 = arith.constant 0 : i32
    %37 = vector.broadcast %c0_i32_15 : i32 to vector<64x128xi32>
    %38 = arith.cmpi ne, %36, %37 : vector<64x128xi32>
    %c0_i32_16 = arith.constant 0 : i32
    %39 = vector.broadcast %c0_i32_16 : i32 to vector<64x128xi32>
    %40 = arith.cmpi slt, %36, %39 : vector<64x128xi32>
    %c0_i32_17 = arith.constant 0 : i32
    %41 = arith.cmpi slt, %34, %c0_i32_17 : i32
    %42 = vector.broadcast %41 : i1 to vector<64x128xi1>
    %43 = vector.broadcast %42 : vector<64x128xi1> to vector<64x128xi1>
    %44 = arith.xori %40, %43 : vector<64x128xi1>
    %45 = arith.andi %44, %38 : vector<64x128xi1>
    %46 = vector.broadcast %34 : i32 to vector<64x128xi32>
    %47 = arith.addi %36, %46 : vector<64x128xi32>
    %48 = arith.select %45, %47, %36 : vector<64x128xi1>, vector<64x128xi32>
    %c15_i32 = arith.constant 15 : i32
    %49 = vector.broadcast %c15_i32 : i32 to vector<64x128xi32>
    %50 = arith.cmpi eq, %48, %49 : vector<64x128xi32>
    %c63_i32 = arith.constant 63 : i32
    %51 = tpu.dynamic_rotate %9 by %c63_i32 dim 0 : vector<64x128xf32>, i32 -> vector<64x128xf32>
    %cst_18 = arith.constant 0.000000e+00 : f32
    %52 = vector.broadcast %cst_18 : f32 to vector<64x128xf32>
    %53 = arith.select %50, %52, %51 : vector<64x128xi1>, vector<64x128xf32>
    %54 = tpu.concatenate %32, %9, %53 in 1 : vector<64x128xf32>, vector<64x128xf32>, vector<64x128xf32> -> vector<64x384xf32>
    %55 = arith.truncf %54 : vector<64x384xf32> to vector<64x384xbf16>
    %c0_19 = arith.constant 0 : index
    %c0_20 = arith.constant 0 : index
    %56 = vector.load %arg4[%c0_19, %c0_20] : memref<384x256xbf16, #tpu.memory_space<vmem>>, vector<384x256xbf16>
    %cst_21 = arith.constant dense<0.000000e+00> : vector<64x256xf32>
    %57 = tpu.matmul %55, %56, %cst_21 {dimension_numbers = #tpu.dot_dimension_numbers<[1], [0], [0], [1], [0, 0, 1, 1], [], []>} : vector<64x384xbf16>, vector<384x256xbf16>, vector<64x256xf32> -> vector<64x256xf32>
    %c0_22 = arith.constant 0 : index
    %c0_23 = arith.constant 0 : index
    %58 = vector.load %arg5[%c0_22, %c0_23] : memref<1x256xf32, #tpu.memory_space<vmem>>, vector<1x256xf32>
    %59 = vector.broadcast %58 : vector<1x256xf32> to vector<64x256xf32>
    %60 = arith.addf %57, %59 : vector<64x256xf32>
    %cst_24 = arith.constant 0.000000e+00 : f32
    %61 = vector.broadcast %cst_24 : f32 to vector<64x256xf32>
    %62 = arith.maximumf %60, %61 : vector<64x256xf32>
    %63 = arith.addf %62, %10 : vector<64x256xf32>
    %c0_25 = arith.constant 0 : index
    %c0_26 = arith.constant 0 : index
    %64 = vector.load %arg6[%c0_25, %c0_26] : memref<64x256xf32, #tpu.memory_space<vmem>>, vector<64x256xf32>
    tpu.vector_store %arg6[%c0_25, %c0_26], %63 {strides = array<i32>} : memref<64x256xf32, #tpu.memory_space<vmem>>, vector<64x256xf32>,
    return
  }
  func.func @transform_0(%arg0: i32) -> (i32, i32) {
    %c0_i32 = arith.constant 0 : i32
    %c0_i32_0 = arith.constant 0 : i32
    return %arg0, %c0_i32 : i32, i32
  }
  func.func @transform_1(%arg0: i32) -> (i32, i32) {
    %c0_i32 = arith.constant 0 : i32
    %c0_i32_0 = arith.constant 0 : i32
    %c0_i32_1 = arith.constant 0 : i32
    return %c0_i32, %c0_i32_0 : i32, i32
  }
  func.func @transform_2(%arg0: i32) -> (i32, i32) {
    %c0_i32 = arith.constant 0 : i32
    %c0_i32_0 = arith.constant 0 : i32
    %c0_i32_1 = arith.constant 0 : i32
    return %c0_i32, %c0_i32_0 : i32, i32
  }
  func.func @transform_3(%arg0: i32) -> (i32, i32) {
    %c0_i32 = arith.constant 0 : i32
    %c0_i32_0 = arith.constant 0 : i32
    %c0_i32_1 = arith.constant 0 : i32
    return %c0_i32, %c0_i32_0 : i32, i32
  }
  func.func @transform_4(%arg0: i32) -> (i32, i32) {
    %c0_i32 = arith.constant 0 : i32
    %c0_i32_0 = arith.constant 0 : i32
    %c0_i32_1 = arith.constant 0 : i32
    return %c0_i32, %c0_i32_0 : i32, i32
  }
  func.func @transform_5(%arg0: i32) -> (i32, i32) {
    %c0_i32 = arith.constant 0 : i32
    %c0_i32_0 = arith.constant 0 : i32
    return %arg0, %c0_i32 : i32, i32
  }
}

</mosaic_0001>

<llo_original>
// kernel: tpu_custom_call.1
$region0: #{tpu_custom_call.1}
  #allocation0 [shape = 'u32[]', space=smem, size = 0x4, offset = 0x4, fixed_abs, tag = 'smem constant byte address 0x4 - core index']
  #allocation1 [shape = 'u32[144,128]{1,0:T(1,128)}', space=vmem, size = 0x12000, scoped, tag = 'internal scratch']
  %s0 = inlined_call_operand.hbm [shape: f32[128,128], index: 0, kind: input, shape index: {}]
  %s1 = inlined_call_operand.hbm [shape: bf16[128,384], index: 1, kind: input, shape index: {}]
  %s2 = inlined_call_operand.vmem [shape: f32[1,384], index: 2, kind: input, shape index: {}]
  %s3 = inlined_call_operand.hbm [shape: bf16[384,256], index: 3, kind: input, shape index: {}]
  %s4 = inlined_call_operand.vmem [shape: f32[1,256], index: 4, kind: input, shape index: {}]
  %s5 = inlined_call_operand.hbm [shape: f32[128,256], index: 5, kind: output, shape index: {}]
  %s6 = sld [smem:[#allocation0]]
  $region65: #{tpu_custom_call.1} parent=0
    _
  %s8 = ssub.s32 1, %s6
  %s9 = scalar_select 0, %s8, %s6
  $region1: #{tpu_custom_call.1} parent=0
    #allocation2 [shape = 'u8[65536]{0}', space=vmem, size = 0x10000, scoped, tag = 'input window, operand 0']
    #allocation3 [shape = 's32[2]{0}', space=sflag, size = 0x8, scoped, tag = 'scoped memory for tpu_custom_call.1']
    #allocation4 [shape = 's32[2]{0}', space=sflag, size = 0x8, scoped, tag = 'scoped memory for tpu_custom_call.1']
    #allocation5 [shape = 'u8[98304]{0}', space=vmem, size = 0x18000, scoped, tag = 'input window, operand 1, single buffered']
    #allocation6 [shape = 's32[1]{0}', space=sflag, size = 0x4, scoped, tag = 'scoped memory for tpu_custom_call.1']
    #allocation7 [shape = 'u8[196608]{0}', space=vmem, size = 0x30000, scoped, tag = 'input window, operand 3, single buffered']
    #allocation8 [shape = 'u8[131072]{0}', space=vmem, size = 0x20000, scoped, tag = 'output window, operand 0']
    %10 = vsyncpa [#allocation3], 0
    %s11 = scalar_lea.sflag [#allocation3], 1
    %12 = vsyncpa %s11, 0
    %13 = vsyncpa [#allocation6], 0
    %14 = vsyncpa [#allocation4], 0
    %s15 = scalar_lea.sflag [#allocation4], 1
    %16 = vsyncpa %s15, 0
    loop: start=0, step=1, limit=4
    $region2: #{tpu_custom_call.1} parent=1 // loop_pre_header
      _
    $region3: #{tpu_custom_call.1} parent=1 // loop_header
      %s18 = sphi 0, %s22
      %p19 = scmp.ge.s32.totalorder %s18, 4
      %s28 = sphi 0, %s30
      %s31 = sphi 0, %s28
      %s32 = sphi 0, %s31
      %s48 = sphi 0, %s32
      %s52 = sphi 0, %s52
      %s54 = sphi 0, %s52
      %s55 = sphi 0, %s54
      %s69 = sphi 0, %s55
      %s73 = sphi 0, %s73
      %s75 = sphi 0, %s73
      %s76 = sphi 0, %s75
      %s90 = sphi 0, %s76
      %s94 = sphi 0, %s94
      %s96 = sphi 0, %s94
      %s97 = sphi 0, %s96
      %s111 = sphi 0, %s97
      %s115 = sphi 0, %s115
      %s117 = sphi 0, %s115
      %s118 = sphi 0, %s117
      %s132 = sphi 0, %s118
      %s138 = sphi 0, %s140
      %s141 = sphi 0, %s138
      %s142 = sphi 0, %s141
      %s158 = sphi 0, %s142
    $region4: #{tpu_custom_call.1} parent=1 // loop_header_branch
      %21 = sbr.rel (%p19) target = $region8
    $region5: #{tpu_custom_call.1} parent=1 // loop_body
      %s23 = ssub.s32 %s18, 1
      %s24 = ssub.s32 %s18, 2
      %s25 = sadd.s32 %s18, 1
      %s26 = ssub.s32 %s18, %s25
      %p27 = scmp.eq.s32.totalorder %s26, 0
      %s29 = sadd.s32 %s28, 1
      %s30 = scalar_select %p27, %s28, %s29
      %p33 = pneg %p27
      %p34 = scmp.eq.s32.totalorder %s18, 1
      %p35 = por %p33, %p34
      %p36 = scmp.ne.s32.totalorder %s28, %s31
      %p37 = scmp.eq.s32.totalorder %s18, 0
      %p38 = por %p36, %p37
      %p39 = scmp.ne.s32.totalorder %s28, %s31
      %p40 = scmp.eq.s32.totalorder %s23, 1
      %p41 = por %p39, %p40
      %p42 = scmp.ne.s32.totalorder %s31, %s32
      %p43 = scmp.eq.s32.totalorder %s23, 0
      %p44 = por %p42, %p43
      %p45 = scmp.ne.s32.totalorder %s31, %s32
      %p46 = scmp.eq.s32.totalorder %s24, 1
      %p47 = por %p45, %p46
      %p49 = scmp.ne.s32.totalorder %s32, %s48
      %p50 = scmp.eq.s32.totalorder %s24, 0
      %p51 = por %p49, %p50
      %s53 = sadd.s32 %s52, 1
      %p56 = scmp.eq.s32.totalorder %s18, 1
      %p57 = scmp.ne.s32.totalorder %s52, %s54
      %p58 = scmp.eq.s32.totalorder %s18, 0
      %p59 = por %p57, %p58
      %p60 = scmp.ne.s32.totalorder %s52, %s54
      %p61 = scmp.eq.s32.totalorder %s23, 1
      %p62 = por %p60, %p61
      %p63 = scmp.ne.s32.totalorder %s54, %s55
      %p64 = scmp.eq.s32.totalorder %s23, 0
      %p65 = por %p63, %p64
      %p66 = scmp.ne.s32.totalorder %s54, %s55
      %p67 = scmp.eq.s32.totalorder %s24, 1
      %p68 = por %p66, %p67
      %p70 = scmp.ne.s32.totalorder %s55, %s69
      %p71 = scmp.eq.s32.totalorder %s24, 0
      %p72 = por %p70, %p71
      %s74 = sadd.s32 %s73, 1
      %p77 = scmp.eq.s32.totalorder %s18, 1
      %p78 = scmp.ne.s32.totalorder %s73, %s75
      %p79 = scmp.eq.s32.totalorder %s18, 0
      %p80 = por %p78, %p79
      %p81 = scmp.ne.s32.totalorder %s73, %s75
      %p82 = scmp.eq.s32.totalorder %s23, 1
      %p83 = por %p81, %p82
      %p84 = scmp.ne.s32.totalorder %s75, %s76
      %p85 = scmp.eq.s32.totalorder %s23, 0
      %p86 = por %p84, %p85
      %p87 = scmp.ne.s32.totalorder %s75, %s76
      %p88 = scmp.eq.s32.totalorder %s24, 1
      %p89 = por %p87, %p88
      %p91 = scmp.ne.s32.totalorder %s76, %s90
      %p92 = scmp.eq.s32.totalorder %s24, 0
      %p93 = por %p91, %p92
      %s95 = sadd.s32 %s94, 1
      %p98 = scmp.eq.s32.totalorder %s18, 1
      %p99 = scmp.ne.s32.totalorder %s94, %s96
      %p100 = scmp.eq.s32.totalorder %s18, 0
      %p101 = por %p99, %p100
      %p102 = scmp.ne.s32.totalorder %s94, %s96
      %p103 = scmp.eq.s32.totalorder %s23, 1
      %p104 = por %p102, %p103
      %p105 = scmp.ne.s32.totalorder %s96, %s97
      %p106 = scmp.eq.s32.totalorder %s23, 0
      %p107 = por %p105, %p106
      %p108 = scmp.ne.s32.totalorder %s96, %s97
      %p109 = scmp.eq.s32.totalorder %s24, 1
      %p110 = por %p108, %p109
      %p112 = scmp.ne.s32.totalorder %s97, %s111
      %p113 = scmp.eq.s32.totalorder %s24, 0
      %p114 = por %p112, %p113
      %s116 = sadd.s32 %s115, 1
      %p119 = scmp.eq.s32.totalorder %s18, 1
      %p120 = scmp.ne.s32.totalorder %s115, %s117
      %p121 = scmp.eq.s32.totalorder %s18, 0
      %p122 = por %p120, %p121
      %p123 = scmp.ne.s32.totalorder %s115, %s117
      %p124 = scmp.eq.s32.totalorder %s23, 1
      %p125 = por %p123, %p124
      %p126 = scmp.ne.s32.totalorder %s117, %s118
      %p127 = scmp.eq.s32.totalorder %s23, 0
      %p128 = por %p126, %p127
      %p129 = scmp.ne.s32.totalorder %s117, %s118
      %p130 = scmp.eq.s32.totalorder %s24, 1
      %p131 = por %p129, %p130
      %p133 = scmp.ne.s32.totalorder %s118, %s132
      %p134 = scmp.eq.s32.totalorder %s24, 0
      %p135 = por %p133, %p134
      %s136 = ssub.s32 %s18, %s25
      %p137 = scmp.eq.s32.totalorder %s136, 0
      %s139 = sadd.s32 %s138, 1
      %s140 = scalar_select %p137, %s138, %s139
      %p143 = pneg %p137
      %p144 = scmp.eq.s32.totalorder %s18, 1
      %p145 = por %p143, %p144
      %p146 = scmp.ne.s32.totalorder %s138, %s141
      %p147 = scmp.eq.s32.totalorder %s18, 0
      %p148 = por %p146, %p147
      %p149 = scmp.ne.s32.totalorder %s138, %s141
      %p150 = scmp.eq.s32.totalorder %s23, 1
      %p151 = por %p149, %p150
      %p152 = scmp.ne.s32.totalorder %s141, %s142
      %p153 = scmp.eq.s32.totalorder %s23, 0
      %p154 = por %p152, %p153
      %p155 = scmp.ne.s32.totalorder %s141, %s142
      %p156 = scmp.eq.s32.totalorder %s24, 1
      %p157 = por %p155, %p156
      %p159 = scmp.ne.s32.totalorder %s142, %s158
      %p160 = scmp.eq.s32.totalorder %s24, 0
      %p161 = por %p159, %p160
      %p162 = scmp.le.s32.totalorder 1, %s18
      %p163 = scmp.lt.s32.totalorder %s18, 3
      %p164 = pnand %p162, %p163
      %p165 = pneg %p164
      // Predicated region
      $region9: #{tpu_custom_call.1} parent=5 // pred_check
        _
      $region10: #{tpu_custom_call.1} parent=5 // pred_check_branch
        %167 = sbr.rel (%p164) target = $region12
      $region11: #{tpu_custom_call.1} parent=5 // pred_region
        %s168 = ssub.s32 %s18, 1
        // Predicated region
        $region13: #{tpu_custom_call.1} parent=11 // pred_check
          %p169 = pneg %p65
        $region14: #{tpu_custom_call.1} parent=11 // pred_check_branch
          %171 = sbr.rel (%p169) target = $region16
        $region15: #{tpu_custom_call.1} parent=11 // pred_region
          %s173 = ssub.s32 3072, 3072
          %174 = vsyncadd [#allocation6], %s173
          %s175 = sshll.u32 [#allocation5], 4
          %s176 = int_to_ptr.vmem [resolvable:$true] %s175
          %181 = dma.hbm_to_vmem [thread:$0]  %s1, 3072, %s176, [#allocation6], 192, 192, 12
        $region16: #{tpu_custom_call.1} parent=11 // pred_fallthru
          _
        // Predicated region
        $region17: #{tpu_custom_call.1} parent=11 // pred_check
          %p182 = pneg %p86
        $region18: #{tpu_custom_call.1} parent=11 // pred_check_branch
          %184 = sbr.rel (%p182) target = $region20
        $region19: #{tpu_custom_call.1} parent=11 // pred_region
          _
        $region20: #{tpu_custom_call.1} parent=11 // pred_fallthru
          _
        // Predicated region
        $region21: #{tpu_custom_call.1} parent=11 // pred_check
          %p185 = pneg %p107
        $region22: #{tpu_custom_call.1} parent=11 // pred_check_branch
          %187 = sbr.rel (%p185) target = $region24
        $region23: #{tpu_custom_call.1} parent=11 // pred_region
          %s189 = ssub.s32 6144, 6144
          %190 = vsyncadd [#allocation6], %s189
          %s191 = sshll.u32 [#allocation7], 4
          %s192 = int_to_ptr.vmem [resolvable:$true] %s191
          %197 = dma.hbm_to_vmem [thread:$0]  %s3, 6144, %s192, [#allocation6], 128, 128, 8
        $region24: #{tpu_custom_call.1} parent=11 // pred_fallthru
          _
        // Predicated region
        $region25: #{tpu_custom_call.1} parent=11 // pred_check
          %p198 = pneg %p128
        $region26: #{tpu_custom_call.1} parent=11 // pred_check_branch
          %200 = sbr.rel (%p198) target = $region28
        $region27: #{tpu_custom_call.1} parent=11 // pred_region
          _
        $region28: #{tpu_custom_call.1} parent=11 // pred_fallthru
          _
      $region12: #{tpu_custom_call.1} parent=5 // pred_fallthru
        _
      %p201 = scmp.lt.s32.totalorder %s18, 2
      // Predicated region
      $region29: #{tpu_custom_call.1} parent=5 // pred_check
        %p202 = pneg %p201
      $region30: #{tpu_custom_call.1} parent=5 // pred_check_branch
        %204 = sbr.rel (%p202) target = $region32
      $region31: #{tpu_custom_call.1} parent=5 // pred_region
        // Predicated region
        $region33: #{tpu_custom_call.1} parent=31 // pred_check
          %p205 = pneg %p38
        $region34: #{tpu_custom_call.1} parent=31 // pred_check_branch
          %207 = sbr.rel (%p205) target = $region36
        $region35: #{tpu_custom_call.1} parent=31 // pred_region
          %s208 = sand.u32 %s28, 1
          %s209 = scalar_lea.sflag [#allocation3], %s208
          %s210 = sand.u32 %s28, 1
          %s211 = smul.addr %s210, 64
          %s212 = scalar_lea.vmem [#allocation2], %s211
          %s213 = smul.u32 8, %s18
          %s215 = ssub.s32 1024, 1024
          %216 = vsyncadd %s209, %s215
          %s217 = smul.addr %s213, 128
          %s218 = scalar_lea.hbm %s0, %s217
          %s219 = sshll.u32 %s212, 4
          %s220 = int_to_ptr.vmem [resolvable:$true] %s219
          %225 = dma.hbm_to_vmem [thread:$0]  %s218, 1024, %s220, %s209, 128, 128, 8
        $region36: #{tpu_custom_call.1} parent=31 // pred_fallthru
          _
      $region32: #{tpu_custom_call.1} parent=5 // pred_fallthru
        _
      %p226 = scmp.le.s32.totalorder 1, %s18
      %p227 = scmp.lt.s32.totalorder %s18, 3
      %p228 = pnand %p226, %p227
      %p229 = pneg %p228
      // Predicated region
      $region37: #{tpu_custom_call.1} parent=5 // pred_check
        _
      $region38: #{tpu_custom_call.1} parent=5 // pred_check_branch
        %231 = sbr.rel (%p228) target = $region40
      $region39: #{tpu_custom_call.1} parent=5 // pred_region
        %s232 = ssub.s32 %s18, 1
        %s233 = sand.u32 %s31, 1
        %s234 = scalar_lea.sflag [#allocation3], %s233
        %s235 = sand.u32 %s31, 1
        %s236 = smul.addr %s235, 64
        %s237 = scalar_lea.vmem [#allocation2], %s236
        // Predicated region
        $region41: #{tpu_custom_call.1} parent=39 // pred_check
          %p238 = pneg %p44
        $region42: #{tpu_custom_call.1} parent=39 // pred_check_branch
          %240 = sbr.rel (%p238) target = $region44
        $region43: #{tpu_custom_call.1} parent=39 // pred_region
          %241 = dma.done %s234, 1024
        $region44: #{tpu_custom_call.1} parent=39 // pred_fallthru
          _
        // Predicated region
        $region45: #{tpu_custom_call.1} parent=39 // pred_check
          %p242 = pneg %p65
        $region46: #{tpu_custom_call.1} parent=39 // pred_check_branch
          %244 = sbr.rel (%p242) target = $region48
        $region47: #{tpu_custom_call.1} parent=39 // pred_region
          %245 = dma.done [#allocation6], 3072
        $region48: #{tpu_custom_call.1} parent=39 // pred_fallthru
          _
        // Predicated region
        $region49: #{tpu_custom_call.1} parent=39 // pred_check
          %p246 = pneg %p107
        $region50: #{tpu_custom_call.1} parent=39 // pred_check_branch
          %248 = sbr.rel (%p246) target = $region52
        $region51: #{tpu_custom_call.1} parent=39 // pred_region
          %249 = dma.done [#allocation6], 6144
        $region52: #{tpu_custom_call.1} parent=39 // pred_fallthru
          _
        %s250 = sand.u32 %s31, 1
        %s251 = scalar_lea.sflag [#allocation3], %s250
        %s252 = sand.u32 %s31, 1
        %s253 = smul.addr %s252, 64
        %s254 = scalar_lea.vmem [#allocation2], %s253
        %p255 = pneg %p44
        %p256 = pneg %p41
        %p257 = pneg %p65
        %p258 = pneg %p62
        %p259 = pneg %p86
        %p260 = pneg %p83
        %p261 = pneg %p107
        %p262 = pneg %p104
        %p263 = pneg %p128
        %p264 = pneg %p125
        %p265 = pneg %p154
        %p266 = pneg %p151
        %s267 = sand.u32 %s141, 1
        %s268 = scalar_lea.sflag [#allocation4], %s267
        %s269 = sand.u32 %s141, 1
        %s270 = smul.addr %s269, 128
        %s271 = scalar_lea.vmem [#allocation8], %s270
        %s272 = smul.u32 8, %s23
        %s273 = smul.u32 8, %s23
        %v275 = vld [vmem:[%s237] sm:$0xff]
        %v276 = vld [vmem:[%s237 + $0x8] sm:$0xff]
        %v277 = vld [vmem:[%s237 + $0x10] sm:$0xff]
        %v278 = vld [vmem:[%s237 + $0x18] sm:$0xff]
        %v279 = vld [vmem:[%s237 + $0x20] sm:$0xff]
        %v280 = vld [vmem:[%s237 + $0x28] sm:$0xff]
        %v281 = vld [vmem:[%s237 + $0x30] sm:$0xff]
        %v282 = vld [vmem:[%s237 + $0x38] sm:$0xff]
        %v283 = vpack.c.bf16 %v276, %v275
        %v284 = vpack.c.bf16 %v278, %v277
        %v285 = vpack.c.bf16 %v280, %v279
        %v286 = vpack.c.bf16 %v282, %v281
        %v287 = vld [vmem:[#allocation5] sm:$0xff]
        %v288 = vld [vmem:[#allocation5 + $0x8] sm:$0xf]
        %v289 = vld [vmem:[#allocation5 + $0xc] sm:$0xff]
        %v290 = vld [vmem:[#allocation5 + $0x14] sm:$0xf]
        %v291 = vld [vmem:[#allocation5 + $0x18] sm:$0xff]
        %v292 = vld [vmem:[#allocation5 + $0x20] sm:$0xf]
        %v293 = vld [vmem:[#allocation5 + $0x24] sm:$0xff]
        %v294 = vld [vmem:[#allocation5 + $0x2c] sm:$0xf]
        %v295 = vld [vmem:[#allocation5 + $0x30] sm:$0xff]
        %v296 = vld [vmem:[#allocation5 + $0x38] sm:$0xf]
        %v297 = vld [vmem:[#allocation5 + $0x3c] sm:$0xff]
        %v298 = vld [vmem:[#allocation5 + $0x44] sm:$0xf]
        %v299 = vld [vmem:[#allocation5 + $0x48] sm:$0xff]
        %v300 = vld [vmem:[#allocation5 + $0x50] sm:$0xf]
        %v301 = vld [vmem:[#allocation5 + $0x54] sm:$0xff]
        %v302 = vld [vmem:[#allocation5 + $0x5c] sm:$0xf]
        %v303 = vld [vmem:[#allocation5 + $0x60] sm:$0xff]
        %v304 = vld [vmem:[#allocation5 + $0x68] sm:$0xf]
        %v305 = vld [vmem:[#allocation5 + $0x6c] sm:$0xff]
        %v306 = vld [vmem:[#allocation5 + $0x74] sm:$0xf]
        %v307 = vld [vmem:[#allocation5 + $0x78] sm:$0xff]
        %v308 = vld [vmem:[#allocation5 + $0x80] sm:$0xf]
        %v309 = vld [vmem:[#allocation5 + $0x84] sm:$0xff]
        %v310 = vld [vmem:[#allocation5 + $0x8c] sm:$0xf]
        %v311 = vld [vmem:[#allocation5 + $0x90] sm:$0xff]
        %v312 = vld [vmem:[#allocation5 + $0x98] sm:$0xf]
        %v313 = vld [vmem:[#allocation5 + $0x9c] sm:$0xff]
        %v314 = vld [vmem:[#allocation5 + $0xa4] sm:$0xf]
        %v315 = vld [vmem:[#allocation5 + $0xa8] sm:$0xff]
        %v316 = vld [vmem:[#allocation5 + $0xb0] sm:$0xf]
        %v317 = vld [vmem:[#allocation5 + $0xb4] sm:$0xff]
        %v318 = vld [vmem:[#allocation5 + $0xbc] sm:$0xf]
        %v319 = vld [vmem:[%s2] sm:$0x7]
        %v321 = vlaneseq
        %v322 = vshrl.u32 %v321, 7
        %v323 = vsub.s32 0, %v322
        %v324 = vrot.slane %v319, %v323
        %v325 = vlaneseq
        %v326 = vshrl.u32 %v325, 7
        %v327 = vsub.s32 1, %v326
        %v328 = vrot.slane %v319, %v327
        %v329 = vlaneseq
        %v330 = vshrl.u32 %v329, 7
        %v331 = vsub.s32 2, %v330
        %v332 = vrot.slane %v319, %v331
        %v368 = vunpack.c.l.b16 %v287
        %v369 = vunpack.c.h.b16 %v287
        %v370 = vunpack.c.l.b16 %v288
        %v371 = vunpack.c.l.b16 %v289
        %v372 = vunpack.c.h.b16 %v289
        %v373 = vunpack.c.l.b16 %v290
        %v374 = vunpack.c.l.b16 %v291
        %v375 = vunpack.c.h.b16 %v291
        %v376 = vunpack.c.l.b16 %v292
        %v377 = vunpack.c.l.b16 %v293
        %v378 = vunpack.c.h.b16 %v293
        %v379 = vunpack.c.l.b16 %v294
        %v380 = vunpack.c.l.b16 %v295
        %v381 = vunpack.c.h.b16 %v295
        %v382 = vunpack.c.l.b16 %v296
        %v383 = vunpack.c.l.b16 %v297
        %v384 = vunpack.c.h.b16 %v297
        %v385 = vunpack.c.l.b16 %v298
        %v386 = vunpack.c.l.b16 %v299
        %v387 = vunpack.c.h.b16 %v299
        %v388 = vunpack.c.l.b16 %v300
        %v389 = vunpack.c.l.b16 %v301
        %v390 = vunpack.c.h.b16 %v301
        %v391 = vunpack.c.l.b16 %v302
        %v392 = vunpack.c.l.b16 %v303
        %v393 = vunpack.c.h.b16 %v303
        %v394 = vunpack.c.l.b16 %v304
        %v395 = vunpack.c.l.b16 %v305
        %v396 = vunpack.c.h.b16 %v305
        %v397 = vunpack.c.l.b16 %v306
        %v398 = vunpack.c.l.b16 %v307
        %v399 = vunpack.c.h.b16 %v307
        %v400 = vunpack.c.l.b16 %v308
        %v401 = vunpack.c.l.b16 %v309
        %v402 = vunpack.c.h.b16 %v309
        %v403 = vunpack.c.l.b16 %v310
        %v404 = vunpack.c.l.b16 %v311
        %v405 = vunpack.c.h.b16 %v311
        %v406 = vunpack.c.l.b16 %v312
        %v407 = vunpack.c.l.b16 %v313
        %v408 = vunpack.c.h.b16 %v313
        %v409 = vunpack.c.l.b16 %v314
        %v410 = vunpack.c.l.b16 %v315
        %v411 = vunpack.c.h.b16 %v315
        %v412 = vunpack.c.l.b16 %v316
        %v413 = vunpack.c.l.b16 %v317
        %v414 = vunpack.c.h.b16 %v317
        %v415 = vunpack.c.l.b16 %v318
        %v416 = vpack.c.b16 %v371, %v368
        %v417 = vpack.c.b16 %v372, %v369
        %v418 = vpack.c.b16 %v373, %v370
        %v419 = vpack.c.b16 %v377, %v374
        %v420 = vpack.c.b16 %v378, %v375
        %v421 = vpack.c.b16 %v379, %v376
        %v422 = vpack.c.b16 %v383, %v380
        %v423 = vpack.c.b16 %v384, %v381
        %v424 = vpack.c.b16 %v385, %v382
        %v425 = vpack.c.b16 %v389, %v386
        %v426 = vpack.c.b16 %v390, %v387
        %v427 = vpack.c.b16 %v391, %v388
        %v428 = vpack.c.b16 %v395, %v392
        %v429 = vpack.c.b16 %v396, %v393
        %v430 = vpack.c.b16 %v397, %v394
        %v431 = vpack.c.b16 %v401, %v398
        %v432 = vpack.c.b16 %v402, %v399
        %v433 = vpack.c.b16 %v403, %v400
        %v434 = vpack.c.b16 %v407, %v404
        %v435 = vpack.c.b16 %v408, %v405
        %v436 = vpack.c.b16 %v409, %v406
        %v437 = vpack.c.b16 %v413, %v410
        %v438 = vpack.c.b16 %v414, %v411
        %v439 = vpack.c.b16 %v415, %v412
        %464 = vmatprep.subr.bf16.mxu0 %v417
        %465 = vmatpush1.bf16.msra.mxu0 %v416
        %466 = vmatprep.subr.bf16.mxu0 %v420
        %467 = vmatpush1.bf16.msra.mxu0 %v419
        %468 = vmatprep.subr.bf16.mxu0 %v423
        %469 = vmatpush1.bf16.msra.mxu0 %v422
        %470 = vmatprep.subr.bf16.mxu0 %v426
        %471 = vmatpush1.bf16.msra.mxu0 %v425
        %472 = vmatprep.subr.bf16.mxu0 %v429
        %473 = vmatpush1.bf16.msra.mxu0 %v428
        %474 = vmatprep.subr.bf16.mxu0 %v432
        %475 = vmatpush1.bf16.msra.mxu0 %v431
        %476 = vmatprep.subr.bf16.mxu0 %v435
        %477 = vmatpush1.bf16.msra.mxu0 %v434
        %478 = vmatprep.subr.bf16.mxu0 %v438
        %479 = vmatpush1.bf16.msra.mxu0 %v437
        %480 = vmatprep.subr.bf16.mxu0 0
        %481 = vmatpush1.bf16.msra.mxu0 0
        %482 = vmatprep.subr.bf16.mxu0 0
        %483 = vmatpush1.bf16.msra.mxu0 0
        %484 = vmatprep.subr.bf16.mxu0 0
        %485 = vmatpush1.bf16.msra.mxu0 0
        %486 = vmatprep.subr.bf16.mxu0 0
        %487 = vmatpush1.bf16.msra.mxu0 0
        %488 = vmatprep.subr.bf16.mxu0 0
        %489 = vmatpush1.bf16.msra.mxu0 0
        %490 = vmatprep.subr.bf16.mxu0 0
        %491 = vmatpush1.bf16.msra.mxu0 0
        %492 = vmatprep.subr.bf16.mxu0 0
        %493 = vmatpush1.bf16.msra.mxu0 0
        %494 = vmatprep.subr.bf16.mxu0 0
        %495 = vmatpush1.bf16.msra.mxu0 0
        %496 = vmatprep.mubr.bf16.mxu0 0
        %497 = vmatmul.mubr.bf16.gmra.mrb[0].mxu0 %v283
        %v498 = vpop.f32.mrb[0].mxu0
        %v499 = vadd.f32 %v324, %v498
        %v500 = vpop.f32.mrb[0].mxu0
        %v501 = vadd.f32 %v328, %v500
        %v502 = vpop.f32.mrb[0].mxu0
        %v503 = vadd.f32 %v324, %v502
        %v504 = vpop.f32.mrb[0].mxu0
        %v505 = vadd.f32 %v328, %v504
        %506 = vmatprep.mubr.bf16.mxu0 0
        %507 = vmatmul.mubr.bf16.gmra.mrb[0].mxu0 %v284
        %v508 = vpop.f32.mrb[0].mxu0
        %v509 = vadd.f32 %v324, %v508
        %v510 = vpop.f32.mrb[0].mxu0
        %v511 = vadd.f32 %v328, %v510
        %v512 = vpop.f32.mrb[0].mxu0
        %v513 = vadd.f32 %v324, %v512
        %v514 = vpop.f32.mrb[0].mxu0
        %v515 = vadd.f32 %v328, %v514
        %516 = vmatprep.mubr.bf16.mxu0 0
        %517 = vmatmul.mubr.bf16.gmra.mrb[0].mxu0 %v285
        %v518 = vpop.f32.mrb[0].mxu0
        %v519 = vadd.f32 %v324, %v518
        %v520 = vpop.f32.mrb[0].mxu0
        %v521 = vadd.f32 %v328, %v520
        %v522 = vpop.f32.mrb[0].mxu0
        %v523 = vadd.f32 %v324, %v522
        %v524 = vpop.f32.mrb[0].mxu0
        %v525 = vadd.f32 %v328, %v524
        %526 = vmatprep.mubr.bf16.mxu0 0
        %527 = vmatmul.mubr.bf16.gmra.mrb[0].mxu0 %v286
        %v528 = vpop.f32.mrb[0].mxu0
        %v529 = vadd.f32 %v324, %v528
        %v530 = vpop.f32.mrb[0].mxu0
        %v531 = vadd.f32 %v328, %v530
        %v532 = vpop.f32.mrb[0].mxu0
        %v533 = vadd.f32 %v324, %v532
        %v534 = vpop.f32.mrb[0].mxu0
        %v535 = vadd.f32 %v328, %v534
        %536 = vdwg.mxu0
        %537 = vmatprep.subr.bf16.mxu0 0
        %538 = vmatpush1.bf16.msra.mxu0 %v418
        %539 = vmatprep.subr.bf16.mxu0 0
        %540 = vmatpush1.bf16.msra.mxu0 %v421
        %541 = vmatprep.subr.bf16.mxu0 0
        %542 = vmatpush1.bf16.msra.mxu0 %v424
        %543 = vmatprep.subr.bf16.mxu0 0
        %544 = vmatpush1.bf16.msra.mxu0 %v427
        %545 = vmatprep.subr.bf16.mxu0 0
        %546 = vmatpush1.bf16.msra.mxu0 %v430
        %547 = vmatprep.subr.bf16.mxu0 0
        %548 = vmatpush1.bf16.msra.mxu0 %v433
        %549 = vmatprep.subr.bf16.mxu0 0
        %550 = vmatpush1.bf16.msra.mxu0 %v436
        %551 = vmatprep.subr.bf16.mxu0 0
        %552 = vmatpush1.bf16.msra.mxu0 %v439
        %553 = vmatprep.subr.bf16.mxu0 0
        %554 = vmatpush1.bf16.msra.mxu0 0
        %555 = vmatprep.subr.bf16.mxu0 0
        %556 = vmatpush1.bf16.msra.mxu0 0
        %557 = vmatprep.subr.bf16.mxu0 0
        %558 = vmatpush1.bf16.msra.mxu0 0
        %559 = vmatprep.subr.bf16.mxu0 0
        %560 = vmatpush1.bf16.msra.mxu0 0
        %561 = vmatprep.subr.bf16.mxu0 0
        %562 = vmatpush1.bf16.msra.mxu0 0
        %563 = vmatprep.subr.bf16.mxu0 0
        %564 = vmatpush1.bf16.msra.mxu0 0
        %565 = vmatprep.subr.bf16.mxu0 0
        %566 = vmatpush1.bf16.msra.mxu0 0
        %567 = vmatprep.subr.bf16.mxu0 0
        %568 = vmatpush1.bf16.msra.mxu0 0
        %569 = vmatprep.mubr.bf16.mxu0 0
        %570 = vmatmul.mubr.bf16.gmra.mrb[0].mxu0 %v283
        %v571 = vpop.f32.mrb[0].mxu0
        %v572 = vadd.f32 %v332, %v571
        %v573 = vpop.f32.mrb[0].mxu0
        %v574 = vpop.f32.mrb[0].mxu0
        %v575 = vadd.f32 %v332, %v574
        %v576 = vpop.f32.mrb[0].mxu0
        %577 = vmatprep.mubr.bf16.mxu0 0
        %578 = vmatmul.mubr.bf16.gmra.mrb[0].mxu0 %v284
        %v579 = vpop.f32.mrb[0].mxu0
        %v580 = vadd.f32 %v332, %v579
        %v581 = vpop.f32.mrb[0].mxu0
        %v582 = vpop.f32.mrb[0].mxu0
        %v583 = vadd.f32 %v332, %v582
        %v584 = vpop.f32.mrb[0].mxu0
        %585 = vmatprep.mubr.bf16.mxu0 0
        %586 = vmatmul.mubr.bf16.gmra.mrb[0].mxu0 %v285
        %v587 = vpop.f32.mrb[0].mxu0
        %v588 = vadd.f32 %v332, %v587
        %v589 = vpop.f32.mrb[0].mxu0
        %v590 = vpop.f32.mrb[0].mxu0
        %v591 = vadd.f32 %v332, %v590
        %v592 = vpop.f32.mrb[0].mxu0
        %593 = vmatprep.mubr.bf16.mxu0 0
        %594 = vmatmul.mubr.bf16.gmra.mrb[0].mxu0 %v286
        %v595 = vpop.f32.mrb[0].mxu0
        %v596 = vadd.f32 %v332, %v595
        %v597 = vpop.f32.mrb[0].mxu0
        %v598 = vpop.f32.mrb[0].mxu0
        %v599 = vadd.f32 %v332, %v598
        %v600 = vpop.f32.mrb[0].mxu0
        %601 = vdwg.mxu0
        %v602 = vmax.f32 %v499, 0.0
        %v603 = vmax.f32 %v501, 0.0
        %v604 = vmax.f32 %v572, 0.0
        %v605 = vmax.f32 %v503, 0.0
        %v606 = vmax.f32 %v505, 0.0
        %v607 = vmax.f32 %v575, 0.0
        %v608 = vmax.f32 %v509, 0.0
        %v609 = vmax.f32 %v511, 0.0
        %v610 = vmax.f32 %v580, 0.0
        %v611 = vmax.f32 %v513, 0.0
        %v612 = vmax.f32 %v515, 0.0
        %v613 = vmax.f32 %v583, 0.0
        %v614 = vmax.f32 %v519, 0.0
        %v615 = vmax.f32 %v521, 0.0
        %v616 = vmax.f32 %v588, 0.0
        %v617 = vmax.f32 %v523, 0.0
        %v618 = vmax.f32 %v525, 0.0
        %v619 = vmax.f32 %v591, 0.0
        %v620 = vmax.f32 %v529, 0.0
        %v621 = vmax.f32 %v531, 0.0
        %v622 = vmax.f32 %v596, 0.0
        %v623 = vmax.f32 %v533, 0.0
        %v624 = vmax.f32 %v535, 0.0
        %v625 = vmax.f32 %v599, 0.0
        %v626 = vlaneseq
        %v627 = vshrl.u32 %v626, 7
        %v628 = vadd.s32 %v627, 8
        %v629 = vadd.s32 %v627, 16
        %v630 = vadd.s32 %v627, 24
        %v631 = vadd.s32 %v627, 32
        %v632 = vadd.s32 %v627, 40
        %v633 = vadd.s32 %v627, 48
        %v634 = vadd.s32 %v627, 56
        %vm635 = vcmp.lt.s32.totalorder %v627, 0
        %v636 = vsub.s32 0, %v627
        %v637 = vsel %vm635, %v636, %v627
        %v638 = vshrl.u32 %v637, 4
        %v639 = vand.u32 %v637, 15
        %v640 = vsub.s32 0, %v639
        %v641 = vsel %vm635, %v640, %v639
        %vm642 = vcmp.lt.s32.totalorder %v628, 0
        %v643 = vsub.s32 0, %v628
        %v644 = vsel %vm642, %v643, %v628
        %v645 = vshrl.u32 %v644, 4
        %v646 = vand.u32 %v644, 15
        %v647 = vsub.s32 0, %v646
        %v648 = vsel %vm642, %v647, %v646
        %vm649 = vcmp.lt.s32.totalorder %v629, 0
        %v650 = vsub.s32 0, %v629
        %v651 = vsel %vm649, %v650, %v629
        %v652 = vshrl.u32 %v651, 4
        %v653 = vand.u32 %v651, 15
        %v654 = vsub.s32 0, %v653
        %v655 = vsel %vm649, %v654, %v653
        %vm656 = vcmp.lt.s32.totalorder %v630, 0
        %v657 = vsub.s32 0, %v630
        %v658 = vsel %vm656, %v657, %v630
        %v659 = vshrl.u32 %v658, 4
        %v660 = vand.u32 %v658, 15
        %v661 = vsub.s32 0, %v660
        %v662 = vsel %vm656, %v661, %v660
        %vm663 = vcmp.lt.s32.totalorder %v631, 0
        %v664 = vsub.s32 0, %v631
        %v665 = vsel %vm663, %v664, %v631
        %v666 = vshrl.u32 %v665, 4
        %v667 = vand.u32 %v665, 15
        %v668 = vsub.s32 0, %v667
        %v669 = vsel %vm663, %v668, %v667
        %vm670 = vcmp.lt.s32.totalorder %v632, 0
        %v671 = vsub.s32 0, %v632
        %v672 = vsel %vm670, %v671, %v632
        %v673 = vshrl.u32 %v672, 4
        %v674 = vand.u32 %v672, 15
        %v675 = vsub.s32 0, %v674
        %v676 = vsel %vm670, %v675, %v674
        %vm677 = vcmp.lt.s32.totalorder %v633, 0
        %v678 = vsub.s32 0, %v633
        %v679 = vsel %vm677, %v678, %v633
        %v680 = vshrl.u32 %v679, 4
        %v681 = vand.u32 %v679, 15
        %v682 = vsub.s32 0, %v681
        %v683 = vsel %vm677, %v682, %v681
        %vm684 = vcmp.lt.s32.totalorder %v634, 0
        %v685 = vsub.s32 0, %v634
        %v686 = vsel %vm684, %v685, %v634
        %v687 = vshrl.u32 %v686, 4
        %v688 = vand.u32 %v686, 15
        %v689 = vsub.s32 0, %v688
        %v690 = vsel %vm684, %v689, %v688
        %vm691 = vcmp.ne.s32.totalorder %v641, 0
        %vm692 = vcmp.ne.s32.totalorder %v648, 0
        %vm693 = vcmp.ne.s32.totalorder %v655, 0
        %vm694 = vcmp.ne.s32.totalorder %v662, 0
        %vm695 = vcmp.ne.s32.totalorder %v669, 0
        %vm696 = vcmp.ne.s32.totalorder %v676, 0
        %vm697 = vcmp.ne.s32.totalorder %v683, 0
        %vm698 = vcmp.ne.s32.totalorder %v690, 0
        %vm699 = vcmp.lt.s32.totalorder %v641, 0
        %vm700 = vcmp.lt.s32.totalorder %v648, 0
        %vm701 = vcmp.lt.s32.totalorder %v655, 0
        %vm702 = vcmp.lt.s32.totalorder %v662, 0
        %vm703 = vcmp.lt.s32.totalorder %v669, 0
        %vm704 = vcmp.lt.s32.totalorder %v676, 0
        %vm705 = vcmp.lt.s32.totalorder %v683, 0
        %vm706 = vcmp.lt.s32.totalorder %v690, 0
        %vm707 = vmand %vm699, %vm691
        %vm708 = vmand %vm700, %vm692
        %vm709 = vmand %vm701, %vm693
        %vm710 = vmand %vm702, %vm694
        %vm711 = vmand %vm703, %vm695
        %vm712 = vmand %vm704, %vm696
        %vm713 = vmand %vm705, %vm697
        %vm714 = vmand %vm706, %vm698
        %v715 = vadd.s32 %v641, 16
        %v716 = vadd.s32 %v648, 16
        %v717 = vadd.s32 %v655, 16
        %v718 = vadd.s32 %v662, 16
        %v719 = vadd.s32 %v669, 16
        %v720 = vadd.s32 %v676, 16
        %v721 = vadd.s32 %v683, 16
        %v722 = vadd.s32 %v690, 16
        %v723 = vsel %vm707, %v715, %v641
        %v724 = vsel %vm708, %v716, %v648
        %v725 = vsel %vm709, %v717, %v655
        %v726 = vsel %vm710, %v718, %v662
        %v727 = vsel %vm711, %v719, %v669
        %v728 = vsel %vm712, %v720, %v676
        %v729 = vsel %vm713, %v721, %v683
        %v730 = vsel %vm714, %v722, %v690
        %vm731 = vcmp.eq.s32.totalorder %v723, 0
        %vm732 = vcmp.eq.s32.totalorder %v724, 0
        %vm733 = vcmp.eq.s32.totalorder %v725, 0
        %vm734 = vcmp.eq.s32.totalorder %v726, 0
        %vm735 = vcmp.eq.s32.totalorder %v727, 0
        %vm736 = vcmp.eq.s32.totalorder %v728, 0
        %vm737 = vcmp.eq.s32.totalorder %v729, 0
        %vm738 = vcmp.eq.s32.totalorder %v730, 0
        %v739 = vrot.slane %v602, 7
        %v740 = vrot.slane %v605, 7
        %v741 = vrot.slane %v608, 7
        %v742 = vrot.slane %v611, 7
        %v743 = vrot.slane %v614, 7
        %v744 = vrot.slane %v617, 7
        %v745 = vrot.slane %v620, 7
        %v746 = vrot.slane %v623, 7
        %vm747 = vcmp.lt.s32.totalorder %v627, 1
        %v748 = vsel %vm747, %v745, %v746
        %v749 = vsel %vm747, %v744, %v745
        %v750 = vsel %vm747, %v743, %v744
        %v751 = vsel %vm747, %v742, %v743
        %v752 = vsel %vm747, %v741, %v742
        %v753 = vsel %vm747, %v740, %v741
        %v754 = vsel %vm747, %v739, %v740
        %v755 = vsel %vm747, %v746, %v739
        %v756 = vsel %vm731, 0.0, %v755
        %v757 = vsel %vm732, 0.0, %v754
        %v758 = vsel %vm733, 0.0, %v753
        %v759 = vsel %vm734, 0.0, %v752
        %v760 = vsel %vm735, 0.0, %v751
        %v761 = vsel %vm736, 0.0, %v750
        %v762 = vsel %vm737, 0.0, %v749
        %v763 = vsel %vm738, 0.0, %v748
        %vm764 = vcmp.eq.s32.totalorder %v723, 15
        %vm765 = vcmp.eq.s32.totalorder %v724, 15
        %vm766 = vcmp.eq.s32.totalorder %v725, 15
        %vm767 = vcmp.eq.s32.totalorder %v726, 15
        %vm768 = vcmp.eq.s32.totalorder %v727, 15
        %vm769 = vcmp.eq.s32.totalorder %v728, 15
        %vm770 = vcmp.eq.s32.totalorder %v729, 15
        %vm771 = vcmp.eq.s32.totalorder %v730, 15
        %v772 = vrot.slane %v602, 1
        %v773 = vrot.slane %v605, 1
        %v774 = vrot.slane %v608, 1
        %v775 = vrot.slane %v611, 1
        %v776 = vrot.slane %v614, 1
        %v777 = vrot.slane %v617, 1
        %v778 = vrot.slane %v620, 1
        %v779 = vrot.slane %v623, 1
        %vm780 = vcmp.lt.s32.totalorder %v627, 7
        %v781 = vsel %vm780, %v778, %v779
        %v782 = vsel %vm780, %v777, %v778
        %v783 = vsel %vm780, %v776, %v777
        %v784 = vsel %vm780, %v775, %v776
        %v785 = vsel %vm780, %v774, %v775
        %v786 = vsel %vm780, %v773, %v774
        %v787 = vsel %vm780, %v772, %v773
        %v788 = vsel %vm780, %v779, %v772
        %v789 = vsel %vm764, 0.0, %v787
        %v790 = vsel %vm765, 0.0, %v786
        %v791 = vsel %vm766, 0.0, %v785
        %v792 = vsel %vm767, 0.0, %v784
        %v793 = vsel %vm768, 0.0, %v783
        %v794 = vsel %vm769, 0.0, %v782
        %v795 = vsel %vm770, 0.0, %v781
        %v796 = vsel %vm771, 0.0, %v788
        %v797 = vpack.c.bf16 %v757, %v756
        %v798 = vpack.c.bf16 %v605, %v602
        %v799 = vpack.c.bf16 %v790, %v789
        %v800 = vpack.c.bf16 %v759, %v758
        %v801 = vpack.c.bf16 %v611, %v608
        %v802 = vpack.c.bf16 %v792, %v791
        %v803 = vpack.c.bf16 %v761, %v760
        %v804 = vpack.c.bf16 %v617, %v614
        %v805 = vpack.c.bf16 %v794, %v793
        %v806 = vpack.c.bf16 %v763, %v762
        %v807 = vpack.c.bf16 %v623, %v620
        %v808 = vpack.c.bf16 %v796, %v795
        %v809 = vld [vmem:[#allocation7] sm:$0xff]
        %v810 = vld [vmem:[#allocation7 + $0x8] sm:$0xff]
        %v811 = vld [vmem:[#allocation7 + $0x10] sm:$0xff]
        %v812 = vld [vmem:[#allocation7 + $0x18] sm:$0xff]
        %v813 = vld [vmem:[#allocation7 + $0x20] sm:$0xff]
        %v814 = vld [vmem:[#allocation7 + $0x28] sm:$0xff]
        %v815 = vld [vmem:[#allocation7 + $0x30] sm:$0xff]
        %v816 = vld [vmem:[#allocation7 + $0x38] sm:$0xff]
        %v817 = vld [vmem:[#allocation7 + $0x40] sm:$0xff]
        %v818 = vld [vmem:[#allocation7 + $0x48] sm:$0xff]
        %v819 = vld [vmem:[#allocation7 + $0x50] sm:$0xff]
        %v820 = vld [vmem:[#allocation7 + $0x58] sm:$0xff]
        %v821 = vld [vmem:[#allocation7 + $0x60] sm:$0xff]
        %v822 = vld [vmem:[#allocation7 + $0x68] sm:$0xff]
        %v823 = vld [vmem:[#allocation7 + $0x70] sm:$0xff]
        %v824 = vld [vmem:[#allocation7 + $0x78] sm:$0xff]
        %v825 = vld [vmem:[#allocation7 + $0x80] sm:$0xff]
        %v826 = vld [vmem:[#allocation7 + $0x88] sm:$0xff]
        %v827 = vld [vmem:[#allocation7 + $0x90] sm:$0xff]
        %v828 = vld [vmem:[#allocation7 + $0x98] sm:$0xff]
        %v829 = vld [vmem:[#allocation7 + $0xa0] sm:$0xff]
        %v830 = vld [vmem:[#allocation7 + $0xa8] sm:$0xff]
        %v831 = vld [vmem:[#allocation7 + $0xb0] sm:$0xff]
        %v832 = vld [vmem:[#allocation7 + $0xb8] sm:$0xff]
        %v833 = vld [vmem:[#allocation7 + $0xc0] sm:$0xff]
        %v834 = vld [vmem:[#allocation7 + $0xc8] sm:$0xff]
        %v835 = vld [vmem:[#allocation7 + $0xd0] sm:$0xff]
        %v836 = vld [vmem:[#allocation7 + $0xd8] sm:$0xff]
        %v837 = vld [vmem:[#allocation7 + $0xe0] sm:$0xff]
        %v838 = vld [vmem:[#allocation7 + $0xe8] sm:$0xff]
        %v839 = vld [vmem:[#allocation7 + $0xf0] sm:$0xff]
        %v840 = vld [vmem:[#allocation7 + $0xf8] sm:$0xff]
        %v841 = vld [vmem:[#allocation7 + $0x100] sm:$0xff]
        %v842 = vld [vmem:[#allocation7 + $0x108] sm:$0xff]
        %v843 = vld [vmem:[#allocation7 + $0x110] sm:$0xff]
        %v844 = vld [vmem:[#allocation7 + $0x118] sm:$0xff]
        %v845 = vld [vmem:[#allocation7 + $0x120] sm:$0xff]
        %v846 = vld [vmem:[#allocation7 + $0x128] sm:$0xff]
        %v847 = vld [vmem:[#allocation7 + $0x130] sm:$0xff]
        %v848 = vld [vmem:[#allocation7 + $0x138] sm:$0xff]
        %v849 = vld [vmem:[#allocation7 + $0x140] sm:$0xff]
        %v850 = vld [vmem:[#allocation7 + $0x148] sm:$0xff]
        %v851 = vld [vmem:[#allocation7 + $0x150] sm:$0xff]
        %v852 = vld [vmem:[#allocation7 + $0x158] sm:$0xff]
        %v853 = vld [vmem:[#allocation7 + $0x160] sm:$0xff]
        %v854 = vld [vmem:[#allocation7 + $0x168] sm:$0xff]
        %v855 = vld [vmem:[#allocation7 + $0x170] sm:$0xff]
        %v856 = vld [vmem:[#allocation7 + $0x178] sm:$0xff]
        %v857 = vld [vmem:[%s4] sm:$0x3]
        %v859 = vlaneseq
        %v860 = vshrl.u32 %v859, 7
        %v861 = vsub.s32 0, %v860
        %v862 = vrot.slane %v857, %v861
        %v863 = vlaneseq
        %v864 = vshrl.u32 %v863, 7
        %v865 = vsub.s32 1, %v864
        %v866 = vrot.slane %v857, %v865
        %v917 = vunpack.c.l.b16 %v809
        %v918 = vunpack.c.h.b16 %v809
        %v919 = vunpack.c.l.b16 %v810
        %v920 = vunpack.c.h.b16 %v810
        %v921 = vunpack.c.l.b16 %v811
        %v922 = vunpack.c.h.b16 %v811
        %v923 = vunpack.c.l.b16 %v812
        %v924 = vunpack.c.h.b16 %v812
        %v925 = vunpack.c.l.b16 %v813
        %v926 = vunpack.c.h.b16 %v813
        %v927 = vunpack.c.l.b16 %v814
        %v928 = vunpack.c.h.b16 %v814
        %v929 = vunpack.c.l.b16 %v815
        %v930 = vunpack.c.h.b16 %v815
        %v931 = vunpack.c.l.b16 %v816
        %v932 = vunpack.c.h.b16 %v816
        %v933 = vunpack.c.l.b16 %v817
        %v934 = vunpack.c.h.b16 %v817
        %v935 = vunpack.c.l.b16 %v818
        %v936 = vunpack.c.h.b16 %v818
        %v937 = vunpack.c.l.b16 %v819
        %v938 = vunpack.c.h.b16 %v819
        %v939 = vunpack.c.l.b16 %v820
        %v940 = vunpack.c.h.b16 %v820
        %v941 = vunpack.c.l.b16 %v821
        %v942 = vunpack.c.h.b16 %v821
        %v943 = vunpack.c.l.b16 %v822
        %v944 = vunpack.c.h.b16 %v822
        %v945 = vunpack.c.l.b16 %v823
        %v946 = vunpack.c.h.b16 %v823
        %v947 = vunpack.c.l.b16 %v824
        %v948 = vunpack.c.h.b16 %v824
        %v949 = vunpack.c.l.b16 %v825
        %v950 = vunpack.c.h.b16 %v825
        %v951 = vunpack.c.l.b16 %v826
        %v952 = vunpack.c.h.b16 %v826
        %v953 = vunpack.c.l.b16 %v827
        %v954 = vunpack.c.h.b16 %v827
        %v955 = vunpack.c.l.b16 %v828
        %v956 = vunpack.c.h.b16 %v828
        %v957 = vunpack.c.l.b16 %v829
        %v958 = vunpack.c.h.b16 %v829
        %v959 = vunpack.c.l.b16 %v830
        %v960 = vunpack.c.h.b16 %v830
        %v961 = vunpack.c.l.b16 %v831
        %v962 = vunpack.c.h.b16 %v831
        %v963 = vunpack.c.l.b16 %v832
        %v964 = vunpack.c.h.b16 %v832
        %v965 = vunpack.c.l.b16 %v833
        %v966 = vunpack.c.h.b16 %v833
        %v967 = vunpack.c.l.b16 %v834
        %v968 = vunpack.c.h.b16 %v834
        %v969 = vunpack.c.l.b16 %v835
        %v970 = vunpack.c.h.b16 %v835
        %v971 = vunpack.c.l.b16 %v836
        %v972 = vunpack.c.h.b16 %v836
        %v973 = vunpack.c.l.b16 %v837
        %v974 = vunpack.c.h.b16 %v837
        %v975 = vunpack.c.l.b16 %v838
        %v976 = vunpack.c.h.b16 %v838
        %v977 = vunpack.c.l.b16 %v839
        %v978 = vunpack.c.h.b16 %v839
        %v979 = vunpack.c.l.b16 %v840
        %v980 = vunpack.c.h.b16 %v840
        %v981 = vunpack.c.l.b16 %v841
        %v982 = vunpack.c.h.b16 %v841
        %v983 = vunpack.c.l.b16 %v842
        %v984 = vunpack.c.h.b16 %v842
        %v985 = vunpack.c.l.b16 %v843
        %v986 = vunpack.c.h.b16 %v843
        %v987 = vunpack.c.l.b16 %v844
        %v988 = vunpack.c.h.b16 %v844
        %v989 = vunpack.c.l.b16 %v845
        %v990 = vunpack.c.h.b16 %v845
        %v991 = vunpack.c.l.b16 %v846
        %v992 = vunpack.c.h.b16 %v846
        %v993 = vunpack.c.l.b16 %v847
        %v994 = vunpack.c.h.b16 %v847
        %v995 = vunpack.c.l.b16 %v848
        %v996 = vunpack.c.h.b16 %v848
        %v997 = vunpack.c.l.b16 %v849
        %v998 = vunpack.c.h.b16 %v849
        %v999 = vunpack.c.l.b16 %v850
        %v1000 = vunpack.c.h.b16 %v850
        %v1001 = vunpack.c.l.b16 %v851
        %v1002 = vunpack.c.h.b16 %v851
        %v1003 = vunpack.c.l.b16 %v852
        %v1004 = vunpack.c.h.b16 %v852
        %v1005 = vunpack.c.l.b16 %v853
        %v1006 = vunpack.c.h.b16 %v853
        %v1007 = vunpack.c.l.b16 %v854
        %v1008 = vunpack.c.h.b16 %v854
        %v1009 = vunpack.c.l.b16 %v855
        %v1010 = vunpack.c.h.b16 %v855
        %v1011 = vunpack.c.l.b16 %v856
        %v1012 = vunpack.c.h.b16 %v856
        %v1013 = vpack.c.b16 %v919, %v917
        %v1014 = vpack.c.b16 %v920, %v918
        %v1015 = vpack.c.b16 %v923, %v921
        %v1016 = vpack.c.b16 %v924, %v922
        %v1017 = vpack.c.b16 %v927, %v925
        %v1018 = vpack.c.b16 %v928, %v926
        %v1019 = vpack.c.b16 %v931, %v929
        %v1020 = vpack.c.b16 %v932, %v930
        %v1021 = vpack.c.b16 %v935, %v933
        %v1022 = vpack.c.b16 %v936, %v934
        %v1023 = vpack.c.b16 %v939, %v937
        %v1024 = vpack.c.b16 %v940, %v938
        %v1025 = vpack.c.b16 %v943, %v941
        %v1026 = vpack.c.b16 %v944, %v942
        %v1027 = vpack.c.b16 %v947, %v945
        %v1028 = vpack.c.b16 %v948, %v946
        %v1029 = vpack.c.b16 %v951, %v949
        %v1030 = vpack.c.b16 %v952, %v950
        %v1031 = vpack.c.b16 %v955, %v953
        %v1032 = vpack.c.b16 %v956, %v954
        %v1033 = vpack.c.b16 %v959, %v957
        %v1034 = vpack.c.b16 %v960, %v958
        %v1035 = vpack.c.b16 %v963, %v961
        %v1036 = vpack.c.b16 %v964, %v962
        %v1037 = vpack.c.b16 %v967, %v965
        %v1038 = vpack.c.b16 %v968, %v966
        %v1039 = vpack.c.b16 %v971, %v969
        %v1040 = vpack.c.b16 %v972, %v970
        %v1041 = vpack.c.b16 %v975, %v973
        %v1042 = vpack.c.b16 %v976, %v974
        %v1043 = vpack.c.b16 %v979, %v977
        %v1044 = vpack.c.b16 %v980, %v978
        %v1045 = vpack.c.b16 %v983, %v981
        %v1046 = vpack.c.b16 %v984, %v982
        %v1047 = vpack.c.b16 %v987, %v985
        %v1048 = vpack.c.b16 %v988, %v986
        %v1049 = vpack.c.b16 %v991, %v989
        %v1050 = vpack.c.b16 %v992, %v990
        %v1051 = vpack.c.b16 %v995, %v993
        %v1052 = vpack.c.b16 %v996, %v994
        %v1053 = vpack.c.b16 %v999, %v997
        %v1054 = vpack.c.b16 %v1000, %v998
        %v1055 = vpack.c.b16 %v1003, %v1001
        %v1056 = vpack.c.b16 %v1004, %v1002
        %v1057 = vpack.c.b16 %v1007, %v1005
        %v1058 = vpack.c.b16 %v1008, %v1006
        %v1059 = vpack.c.b16 %v1011, %v1009
        %v1060 = vpack.c.b16 %v1012, %v1010
        %1109 = vmatprep.subr.bf16.mxu0 %v1014
        %1110 = vmatpush1.bf16.msra.mxu0 %v1013
        %1111 = vmatprep.subr.bf16.mxu0 %v1016
        %1112 = vmatpush1.bf16.msra.mxu0 %v1015
        %1113 = vmatprep.subr.bf16.mxu0 %v1018
        %1114 = vmatpush1.bf16.msra.mxu0 %v1017
        %1115 = vmatprep.subr.bf16.mxu0 %v1020
        %1116 = vmatpush1.bf16.msra.mxu0 %v1019
        %1117 = vmatprep.subr.bf16.mxu0 %v1022
        %1118 = vmatpush1.bf16.msra.mxu0 %v1021
        %1119 = vmatprep.subr.bf16.mxu0 %v1024
        %1120 = vmatpush1.bf16.msra.mxu0 %v1023
        %1121 = vmatprep.subr.bf16.mxu0 %v1026
        %1122 = vmatpush1.bf16.msra.mxu0 %v1025
        %1123 = vmatprep.subr.bf16.mxu0 %v1028
        %1124 = vmatpush1.bf16.msra.mxu0 %v1027
        %1125 = vmatprep.subr.bf16.mxu0 %v1030
        %1126 = vmatpush1.bf16.msra.mxu0 %v1029
        %1127 = vmatprep.subr.bf16.mxu0 %v1032
        %1128 = vmatpush1.bf16.msra.mxu0 %v1031
        %1129 = vmatprep.subr.bf16.mxu0 %v1034
        %1130 = vmatpush1.bf16.msra.mxu0 %v1033
        %1131 = vmatprep.subr.bf16.mxu0 %v1036
        %1132 = vmatpush1.bf16.msra.mxu0 %v1035
        %1133 = vmatprep.subr.bf16.mxu0 %v1038
        %1134 = vmatpush1.bf16.msra.mxu0 %v1037
        %1135 = vmatprep.subr.bf16.mxu0 %v1040
        %1136 = vmatpush1.bf16.msra.mxu0 %v1039
        %1137 = vmatprep.subr.bf16.mxu0 %v1042
        %1138 = vmatpush1.bf16.msra.mxu0 %v1041
        %1139 = vmatprep.subr.bf16.mxu0 %v1044
        %1140 = vmatpush1.bf16.msra.mxu0 %v1043
        %1141 = vmatprep.mubr.bf16.mxu0 %v798
        %1142 = vmatmul.mubr.bf16.gmra.mrb[0].mxu0 %v797
        %v1143 = vpop.f32.mrb[0].mxu0
        %v1144 = vadd.f32 %v862, %v1143
        %v1145 = vpop.f32.mrb[0].mxu0
        %v1146 = vadd.f32 %v866, %v1145
        %v1147 = vpop.f32.mrb[0].mxu0
        %v1148 = vadd.f32 %v862, %v1147
        %v1149 = vpop.f32.mrb[0].mxu0
        %v1150 = vadd.f32 %v866, %v1149
        %1151 = vmatprep.mubr.bf16.mxu0 %v801
        %1152 = vmatmul.mubr.bf16.gmra.mrb[0].mxu0 %v800
        %v1153 = vpop.f32.mrb[0].mxu0
        %v1154 = vadd.f32 %v862, %v1153
        %v1155 = vpop.f32.mrb[0].mxu0
        %v1156 = vadd.f32 %v866, %v1155
        %v1157 = vpop.f32.mrb[0].mxu0
        %v1158 = vadd.f32 %v862, %v1157
        %v1159 = vpop.f32.mrb[0].mxu0
        %v1160 = vadd.f32 %v866, %v1159
        %1161 = vmatprep.mubr.bf16.mxu0 %v804
        %1162 = vmatmul.mubr.bf16.gmra.mrb[0].mxu0 %v803
        %v1163 = vpop.f32.mrb[0].mxu0
        %v1164 = vadd.f32 %v862, %v1163
        %v1165 = vpop.f32.mrb[0].mxu0
        %v1166 = vadd.f32 %v866, %v1165
        %v1167 = vpop.f32.mrb[0].mxu0
        %v1168 = vadd.f32 %v862, %v1167
        %v1169 = vpop.f32.mrb[0].mxu0
        %v1170 = vadd.f32 %v866, %v1169
        %1171 = vmatprep.mubr.bf16.mxu0 %v807
        %1172 = vmatmul.mubr.bf16.gmra.mrb[0].mxu0 %v806
        %v1173 = vpop.f32.mrb[0].mxu0
        %v1174 = vadd.f32 %v862, %v1173
        %v1175 = vpop.f32.mrb[0].mxu0
        %v1176 = vadd.f32 %v866, %v1175
        %v1177 = vpop.f32.mrb[0].mxu0
        %v1178 = vadd.f32 %v862, %v1177
        %v1179 = vpop.f32.mrb[0].mxu0
        %v1180 = vadd.f32 %v866, %v1179
        %1181 = vdwg.mxu0
        %1182 = vmatprep.subr.bf16.mxu0 %v1046
        %1183 = vmatpush1.bf16.msra.mxu0 %v1045
        %1184 = vmatprep.subr.bf16.mxu0 %v1048
        %1185 = vmatpush1.bf16.msra.mxu0 %v1047
        %1186 = vmatprep.subr.bf16.mxu0 %v1050
        %1187 = vmatpush1.bf16.msra.mxu0 %v1049
        %1188 = vmatprep.subr.bf16.mxu0 %v1052
        %1189 = vmatpush1.bf16.msra.mxu0 %v1051
        %1190 = vmatprep.subr.bf16.mxu0 %v1054
        %1191 = vmatpush1.bf16.msra.mxu0 %v1053
        %1192 = vmatprep.subr.bf16.mxu0 %v1056
        %1193 = vmatpush1.bf16.msra.mxu0 %v1055
        %1194 = vmatprep.subr.bf16.mxu0 %v1058
        %1195 = vmatpush1.bf16.msra.mxu0 %v1057
        %1196 = vmatprep.subr.bf16.mxu0 %v1060
        %1197 = vmatpush1.bf16.msra.mxu0 %v1059
        %1198 = vmatprep.subr.bf16.mxu0 0
        %1199 = vmatpush1.bf16.msra.mxu0 0
        %1200 = vmatprep.subr.bf16.mxu0 0
        %1201 = vmatpush1.bf16.msra.mxu0 0
        %1202 = vmatprep.subr.bf16.mxu0 0
        %1203 = vmatpush1.bf16.msra.mxu0 0
        %1204 = vmatprep.subr.bf16.mxu0 0
        %1205 = vmatpush1.bf16.msra.mxu0 0
        %1206 = vmatprep.subr.bf16.mxu0 0
        %1207 = vmatpush1.bf16.msra.mxu0 0
        %1208 = vmatprep.subr.bf16.mxu0 0
        %1209 = vmatpush1.bf16.msra.mxu0 0
        %1210 = vmatprep.subr.bf16.mxu0 0
        %1211 = vmatpush1.bf16.msra.mxu0 0
        %1212 = vmatprep.subr.bf16.mxu0 0
        %1213 = vmatpush1.bf16.msra.mxu0 0
        %1214 = vmatprep.mubr.bf16.mxu0 0
        %1215 = vmatmul.mubr.bf16.gmra.mrb[0].mxu0 %v799
        %v1216 = vpop.f32.mrb[0].mxu0
        %v1217 = vadd.f32 %v1144, %v1216
        %v1218 = vpop.f32.mrb[0].mxu0
        %v1219 = vadd.f32 %v1146, %v1218
        %v1220 = vpop.f32.mrb[0].mxu0
        %v1221 = vadd.f32 %v1148, %v1220
        %v1222 = vpop.f32.mrb[0].mxu0
        %v1223 = vadd.f32 %v1150, %v1222
        %1224 = vmatprep.mubr.bf16.mxu0 0
        %1225 = vmatmul.mubr.bf16.gmra.mrb[0].mxu0 %v802
        %v1226 = vpop.f32.mrb[0].mxu0
        %v1227 = vadd.f32 %v1154, %v1226
        %v1228 = vpop.f32.mrb[0].mxu0
        %v1229 = vadd.f32 %v1156, %v1228
        %v1230 = vpop.f32.mrb[0].mxu0
        %v1231 = vadd.f32 %v1158, %v1230
        %v1232 = vpop.f32.mrb[0].mxu0
        %v1233 = vadd.f32 %v1160, %v1232
        %1234 = vmatprep.mubr.bf16.mxu0 0
        %1235 = vmatmul.mubr.bf16.gmra.mrb[0].mxu0 %v805
        %v1236 = vpop.f32.mrb[0].mxu0
        %v1237 = vadd.f32 %v1164, %v1236
        %v1238 = vpop.f32.mrb[0].mxu0
        %v1239 = vadd.f32 %v1166, %v1238
        %v1240 = vpop.f32.mrb[0].mxu0
        %v1241 = vadd.f32 %v1168, %v1240
        %v1242 = vpop.f32.mrb[0].mxu0
        %v1243 = vadd.f32 %v1170, %v1242
        %1244 = vmatprep.mubr.bf16.mxu0 0
        %1245 = vmatmul.mubr.bf16.gmra.mrb[0].mxu0 %v808
        %v1246 = vpop.f32.mrb[0].mxu0
        %v1247 = vadd.f32 %v1174, %v1246
        %v1248 = vpop.f32.mrb[0].mxu0
        %v1249 = vadd.f32 %v1176, %v1248
        %v1250 = vpop.f32.mrb[0].mxu0
        %v1251 = vadd.f32 %v1178, %v1250
        %v1252 = vpop.f32.mrb[0].mxu0
        %v1253 = vadd.f32 %v1180, %v1252
        %1254 = vdwg.mxu0
        %v1255 = vmax.f32 %v1217, 0.0
        %v1256 = vmax.f32 %v1219, 0.0
        %v1257 = vmax.f32 %v1221, 0.0
        %v1258 = vmax.f32 %v1223, 0.0
        %v1259 = vmax.f32 %v1227, 0.0
        %v1260 = vmax.f32 %v1229, 0.0
        %v1261 = vmax.f32 %v1231, 0.0
        %v1262 = vmax.f32 %v1233, 0.0
        %v1263 = vmax.f32 %v1237, 0.0
        %v1264 = vmax.f32 %v1239, 0.0
        %v1265 = vmax.f32 %v1241, 0.0
        %v1266 = vmax.f32 %v1243, 0.0
        %v1267 = vmax.f32 %v1247, 0.0
        %v1268 = vmax.f32 %v1249, 0.0
        %v1269 = vmax.f32 %v1251, 0.0
        %v1270 = vmax.f32 %v1253, 0.0
        %v1271 = vadd.f32 %v1255, %v603
        %v1272 = vadd.f32 %v1256, %v604
        %v1273 = vadd.f32 %v1257, %v606
        %v1274 = vadd.f32 %v1258, %v607
        %v1275 = vadd.f32 %v1259, %v609
        %v1276 = vadd.f32 %v1260, %v610
        %v1277 = vadd.f32 %v1261, %v612
        %v1278 = vadd.f32 %v1262, %v613
        %v1279 = vadd.f32 %v1263, %v615
        %v1280 = vadd.f32 %v1264, %v616
        %v1281 = vadd.f32 %v1265, %v618
        %v1282 = vadd.f32 %v1266, %v619
        %v1283 = vadd.f32 %v1267, %v621
        %v1284 = vadd.f32 %v1268, %v622
        %v1285 = vadd.f32 %v1269, %v624
        %v1286 = vadd.f32 %v1270, %v625
        %1287 = vst [vmem:[%s271] sm:$0xff] %v1271
        %1288 = vst [vmem:[%s271 + $0x8] sm:$0xff] %v1272
        %1289 = vst [vmem:[%s271 + $0x10] sm:$0xff] %v1273
        %1290 = vst [vmem:[%s271 + $0x18] sm:$0xff] %v1274
        %1291 = vst [vmem:[%s271 + $0x20] sm:$0xff] %v1275
        %1292 = vst [vmem:[%s271 + $0x28] sm:$0xff] %v1276
        %1293 = vst [vmem:[%s271 + $0x30] sm:$0xff] %v1277
        %1294 = vst [vmem:[%s271 + $0x38] sm:$0xff] %v1278
        %1295 = vst [vmem:[%s271 + $0x40] sm:$0xff] %v1279
        %1296 = vst [vmem:[%s271 + $0x48] sm:$0xff] %v1280
        %1297 = vst [vmem:[%s271 + $0x50] sm:$0xff] %v1281
        %1298 = vst [vmem:[%s271 + $0x58] sm:$0xff] %v1282
        %1299 = vst [vmem:[%s271 + $0x60] sm:$0xff] %v1283
        %1300 = vst [vmem:[%s271 + $0x68] sm:$0xff] %v1284
        %1301 = vst [vmem:[%s271 + $0x70] sm:$0xff] %v1285
        %1302 = vst [vmem:[%s271 + $0x78] sm:$0xff] %v1286
        %s1303 = sand.u32 %s141, 1
        %s1304 = scalar_lea.sflag [#allocation4], %s1303
        %s1305 = sand.u32 %s141, 1
        %s1306 = smul.addr %s1305, 128
        %s1307 = scalar_lea.vmem [#allocation8], %s1306
        // Predicated region
        $region53: #{tpu_custom_call.1} parent=39 // pred_check
          %p1308 = pneg %p151
        $region54: #{tpu_custom_call.1} parent=39 // pred_check_branch
          %1310 = sbr.rel (%p1308) target = $region56
        $region55: #{tpu_custom_call.1} parent=39 // pred_region
          %s1311 = smul.u32 8, %s23
          %s1313 = ssub.s32 2048, 2048
          %1314 = vsyncadd %s1304, %s1313
          %s1315 = smul.addr %s1311, 2
          %s1316 = smul.addr %s1315, 128
          %s1317 = scalar_lea.hbm %s5, %s1316
          %s1318 = sshll.u32 %s1307, 4
          %s1319 = int_to_ptr.vmem [resolvable:$true] %s1318
          %1324 = dma.vmem_to_hbm [thread:$0]  %s1319, 2048, %s1317, %s1304, 256, 256, 16
        $region56: #{tpu_custom_call.1} parent=39 // pred_fallthru
          _
      $region40: #{tpu_custom_call.1} parent=5 // pred_fallthru
        _
      %p1325 = scmp.le.s32.totalorder 2, %s18
      // Predicated region
      $region57: #{tpu_custom_call.1} parent=5 // pred_check
        %p1326 = pneg %p1325
      $region58: #{tpu_custom_call.1} parent=5 // pred_check_branch
        %1328 = sbr.rel (%p1326) target = $region60
      $region59: #{tpu_custom_call.1} parent=5 // pred_region
        %s1329 = ssub.s32 %s18, 2
        // Predicated region
        $region61: #{tpu_custom_call.1} parent=59 // pred_check
          %p1330 = pneg %p157
        $region62: #{tpu_custom_call.1} parent=59 // pred_check_branch
          %1332 = sbr.rel (%p1330) target = $region64
        $region63: #{tpu_custom_call.1} parent=59 // pred_region
          %s1333 = sand.u32 %s142, 1
          %s1334 = scalar_lea.sflag [#allocation4], %s1333
          %s1335 = sand.u32 %s142, 1
          %s1336 = smul.addr %s1335, 128
          %s1337 = scalar_lea.vmem [#allocation8], %s1336
          %1338 = dma.done %s1334, 2048
        $region64: #{tpu_custom_call.1} parent=59 // pred_fallthru
          _
      $region60: #{tpu_custom_call.1} parent=5 // pred_fallthru
        _
    $region6: #{tpu_custom_call.1} parent=1 // loop_footer
      %s22 = sadd.s32 1, %s18
    $region7: #{tpu_custom_call.1} parent=1 // loop_footer_branch
      %17 = sbr.rel target = $region3
    $region8: #{tpu_custom_call.1} parent=1 // loop_exit
      _
    %1339 = vsyncpa [#allocation3], 1
    %s1340 = scalar_lea.sflag [#allocation3], 1
    %1341 = vsyncpa %s1340, 1
    %1342 = vsyncpa [#allocation6], 1
    %1343 = vsyncpa [#allocation4], 1
    %s1344 = scalar_lea.sflag [#allocation4], 1
    %1345 = vsyncpa %s1344, 1

</llo_original>
